<compile_context>
chip_gen: v5e
topology: v5e:2x2
jax: 0.10.0
libtpu: 0.0.40
codegen_flags: <defaults>
</compile_context>

<pallas_src>
import jax
import jax.numpy as jnp
from jax.experimental import pallas as pl
from jax.experimental.pallas import tpu as pltpu


def _round_up(x, m):
    return ((x + m - 1) // m) * m


def mlp_kernel(x_ref, w1_ref, b1_ref, w2_ref, b2_ref, o_ref):
    # fc1 + ReLU: (TB, D) @ (D, Hp) -> (TB, Hp) on the MXU, f32 accumulate.
    h = jnp.dot(x_ref[...], w1_ref[...], preferred_element_type=jnp.float32)
    h = jnp.maximum(h + b1_ref[...], 0.0)          # b1 is (1, Hp) f32, broadcasts

    # fc2 with out_features=1 as VPU multiply + XLU lane reduce (no N=1 MXU pass).
    # w2 is pre-transposed to a (1, Hp) row; padded columns are zero.
    o = jnp.sum(h * w2_ref[...], axis=-1)          # (TB,)
    o = o + b2_ref[0]                              # scalar bias from SMEM

    # Lane-dense store: one (1, TB) slice of the single (1, Bp) output row.
    o_ref[...] = o[None, :].astype(o_ref.dtype)


def prepare_mlp_params(w1, b1, w2, b2, *, compute_dtype=jnp.float32):
    """One-time layout prep (hoisted out of the per-call hot path).

    w1: (D, H) (transposed vs. PyTorch fc1.weight), b1: (H,),
    w2: (H, 1) (transposed vs. PyTorch fc2.weight), b2: (1,).
    Hidden dim is zero-padded to a multiple of 128 (exact: relu(0)=0 and the
    padded w2 columns are 0) so every hidden-dim tile is lane-aligned.
    """
    D, H = w1.shape
    Hp = _round_up(H, 128)
    w1p = jnp.zeros((D, Hp), compute_dtype).at[:, :H].set(w1.astype(compute_dtype))
    b1p = jnp.zeros((1, Hp), jnp.float32).at[:, :H].set(
        jnp.reshape(b1, (1, H)).astype(jnp.float32))
    w2p = jnp.zeros((1, Hp), jnp.float32).at[:, :H].set(
        jnp.reshape(w2, (1, H)).astype(jnp.float32))   # (H,1) -> (1,Hp) row
    b2s = jnp.reshape(b2, (1,)).astype(jnp.float32)    # scalar, lives in SMEM
    return w1p, b1p, w2p, b2s


def _choose_batch_tiling(B, D, Hp, xbytes, *, max_tb=8192,
                         vmem_tile_budget=24 * 1024 * 1024):
    """Pick (TB, num_tiles): TB a multiple of 128, budgeted for v7x's 64 MiB VMEM."""
    # Per-row VMEM cost: double-buffered x tile + a few (row, Hp) f32 temporaries
    # (h, relu(h), h*w2). Weights are single-buffered and tiny; ignored here.
    bytes_per_row = 2 * D * xbytes + 3 * Hp * 4
    tb_cap = max(128, (vmem_tile_budget // bytes_per_row) // 128 * 128)
    tb_cap = min(tb_cap, max_tb)

    # Prefer an even number (>= 2) of tiles once B is big enough so both v7x
    # TensorCores get work; for tiny B a single lane-aligned tile is fine.
    min_tiles = 2 if B >= 2 * 128 else 1
    num_tiles = max(min_tiles, pl.cdiv(B, tb_cap))
    if num_tiles > 1 and num_tiles % 2:
        num_tiles += 1
    TB = min(tb_cap, _round_up(pl.cdiv(B, num_tiles), 128))
    num_tiles = max(num_tiles, pl.cdiv(B, TB))
    if num_tiles > 1 and num_tiles % 2:
        num_tiles += 1
    return TB, num_tiles


def mlp_forward(x, params, *, max_tb=8192):
    """Equivalent to fc2(relu(fc1(x))). x: (B, D); returns (B, 1) f32."""
    w1p, b1p, w2p, b2s = params
    B, D = x.shape
    Hp = w1p.shape[1]
    compute_dtype = w1p.dtype
    xbytes = jnp.dtype(compute_dtype).itemsize

    TB, num_tiles = _choose_batch_tiling(B, D, Hp, xbytes, max_tb=max_tb)
    Bp = TB * num_tiles

    xp = x.astype(compute_dtype)
    if Bp != B:
        # TODO(synk): for very large ragged B, replace this padded copy with an
        # in-kernel tail mask to avoid an extra HBM round trip of x.
        xp = jnp.zeros((Bp, D), compute_dtype).at[:B, :].set(xp)

    cost = pl.CostEstimate(
        flops=2 * Bp * D * Hp + 3 * Bp * Hp,
        transcendentals=0,
        bytes_accessed=Bp * D * xbytes + D * Hp * xbytes + 2 * Hp * 4 + Bp * 4,
    )

    out_row = pl.pallas_call(
        mlp_kernel,
        out_shape=jax.ShapeDtypeStruct((1, Bp), jnp.float32),
        grid_spec=pltpu.PrefetchScalarGridSpec(
            num_scalar_prefetch=0,
            grid=(num_tiles,),
            in_specs=[
                # x: tiled over the batch axis (auto double-buffered).
                pl.BlockSpec((TB, D), lambda i: (i, 0)),
                # Weights / biases: constant index_map -> VMEM-resident; single
                # buffer (loop-invariant, no point double-buffering).
                pl.BlockSpec((D, Hp), lambda i: (0, 0),
                             pipeline_mode=pl.Buffered(1)),
                pl.BlockSpec((1, Hp), lambda i: (0, 0),
                             pipeline_mode=pl.Buffered(1)),
                pl.BlockSpec((1, Hp), lambda i: (0, 0),
                             pipeline_mode=pl.Buffered(1)),
                # b2: single scalar in SMEM (no VMEM tile / DMA pair).
                pl.BlockSpec(memory_space=pltpu.MemorySpace.SMEM),
            ],
            # Single lane-dense (1, Bp) output row, written in (1, TB) slices.
            out_specs=pl.BlockSpec((1, TB), lambda i: (0, i)),
        ),
        compiler_params=pltpu.CompilerParams(
            # Batch tiles are independent -> shard across TCs on v7x megacore.
            dimension_semantics=("parallel",),
            # Budget against v7x's 64 MiB physical VMEM with headroom.
            vmem_limit_bytes=40 * 1024 * 1024,
        ),
        cost_estimate=cost,
    )(xp, w1p, b1p, w2p, b2s)

    # Valid batch rows back as the (B, 1) column the module returns.
    return out_row[0, :B].reshape(B, 1)


def init_mlp_params(key, input_dim, hidden_size):
    """Deterministic init matching PyTorch nn.Linear (uniform +/- 1/sqrt(fan_in))."""
    k1, k2, k3, k4 = jax.random.split(key, 4)
    bound1 = 1.0 / jnp.sqrt(input_dim)
    bound2 = 1.0 / jnp.sqrt(hidden_size)
    # Stored transposed relative to PyTorch (out_features, in_features) layout.
    w1 = jax.random.uniform(k1, (input_dim, hidden_size), jnp.float32, -bound1, bound1)
    b1 = jax.random.uniform(k2, (hidden_size,), jnp.float32, -bound1, bound1)
    w2 = jax.random.uniform(k3, (hidden_size, 1), jnp.float32, -bound2, bound2)
    b2 = jax.random.uniform(k4, (1,), jnp.float32, -bound2, bound2)
    return w1, b1, w2, b2


if __name__ == "__main__":
    key = jax.random.PRNGKey(0)
    kx, kp = jax.random.split(key)

    batch = 8
    input_dim = 32
    hidden_size = 100  # module default

    x = jax.random.normal(kx, (batch, input_dim), dtype=jnp.float32)
    w1, b1, w2, b2 = init_mlp_params(kp, input_dim, hidden_size)

    # One-time layout prep (outside the per-call hot path). f32 keeps the tiny
    # demo exact; pass compute_dtype=jnp.bfloat16 once D/H are non-trivial.
    params = prepare_mlp_params(w1, b1, w2, b2, compute_dtype=jnp.float32)

    out = mlp_forward(x, params)
    out = jax.block_until_ready(out)

    # Reference in plain JAX (same math as the PyTorch module).
    ref = jnp.maximum(x @ w1 + b1[None, :], 0.0) @ w2 + b2[None, :]
    assert out.shape == (batch, 1)
    assert jnp.allclose(out, ref, atol=1e-4, rtol=1e-4), float(
        jnp.max(jnp.abs(out - ref)))

    print("KERNEL_OK")
</pallas_src>

<mosaic_0001>
module attributes {stable_mosaic.version = 11 : i64} {
  func.func @mlp_kernel(%arg0: i32, %arg1: memref<128x32xf32, #tpu.memory_space<vmem>>, %arg2: memref<32x128xf32, #tpu.memory_space<vmem>>, %arg3: memref<1x128xf32, #tpu.memory_space<vmem>>, %arg4: memref<1x128xf32, #tpu.memory_space<vmem>>, %arg5: memref<1xf32, #tpu.memory_space<smem>>, %arg6: memref<1x128xf32, #tpu.memory_space<vmem>>) attributes {dimension_semantics = [#tpu.dimension_semantics<parallel>], iteration_bounds = array<i64: 1>, scalar_prefetch = 0 : i64, scratch_operands = 0 : i64, tpu.core_type = #tpu.core_type<tc>, window_params = [{transform_indices = @transform_0, window_bounds = array<i64: 128, 32>}, {pipeline_mode = #tpu.pipeline_mode<synchronous>, transform_indices = @transform_1, window_bounds = array<i64: 32, 128>}, {pipeline_mode = #tpu.pipeline_mode<synchronous>, transform_indices = @transform_2, window_bounds = array<i64: 1, 128>}, {pipeline_mode = #tpu.pipeline_mode<synchronous>, transform_indices = @transform_3, window_bounds = array<i64: 1, 128>}, {transform_indices = @transform_4, window_bounds = array<i64: 1>}, {transform_indices = @transform_5, window_bounds = array<i64: 1, 128>}]} {
    %c0 = arith.constant 0 : index
    %c0_0 = arith.constant 0 : index
    %0 = vector.load %arg1[%c0, %c0_0] : memref<128x32xf32, #tpu.memory_space<vmem>>, vector<128x32xf32>
    %c0_1 = arith.constant 0 : index
    %c0_2 = arith.constant 0 : index
    %1 = vector.load %arg2[%c0_1, %c0_2] : memref<32x128xf32, #tpu.memory_space<vmem>>, vector<32x128xf32>
    %cst = arith.constant dense<0.000000e+00> : vector<128x128xf32>
    %2 = tpu.matmul %0, %1, %cst {dimension_numbers = #tpu.dot_dimension_numbers<[1], [0], [0], [1], [0, 0, 1, 1], [], []>} : vector<128x32xf32>, vector<32x128xf32>, vector<128x128xf32> -> vector<128x128xf32>
    %c0_3 = arith.constant 0 : index
    %c0_4 = arith.constant 0 : index
    %3 = vector.load %arg3[%c0_3, %c0_4] : memref<1x128xf32, #tpu.memory_space<vmem>>, vector<1x128xf32>
    %4 = vector.broadcast %3 : vector<1x128xf32> to vector<128x128xf32>
    %5 = arith.addf %2, %4 : vector<128x128xf32>
    %cst_5 = arith.constant 0.000000e+00 : f32
    %6 = vector.broadcast %cst_5 : f32 to vector<128x128xf32>
    %7 = arith.maximumf %5, %6 : vector<128x128xf32>
    %c0_6 = arith.constant 0 : index
    %c0_7 = arith.constant 0 : index
    %8 = vector.load %arg4[%c0_6, %c0_7] : memref<1x128xf32, #tpu.memory_space<vmem>>, vector<1x128xf32>
    %9 = vector.broadcast %8 : vector<1x128xf32> to vector<128x128xf32>
    %10 = arith.mulf %7, %9 : vector<128x128xf32>
    %cst_8 = arith.constant dense<0.000000e+00> : vector<128xf32>
    %11 = vector.multi_reduction <add>, %10, %cst_8 [1] : vector<128x128xf32> to vector<128xf32>
    %c0_9 = arith.constant 0 : index
    %12 = memref.load %arg5[%c0_9] : memref<1xf32, #tpu.memory_space<smem>>
    %13 = vector.broadcast %12 : f32 to vector<128xf32>
    %14 = arith.addf %11, %13 : vector<128xf32>
    %15 = vector.shape_cast %14 : vector<128xf32> to vector<1x128xf32>
    %c0_10 = arith.constant 0 : index
    %c0_11 = arith.constant 0 : index
    %16 = vector.load %arg6[%c0_10, %c0_11] : memref<1x128xf32, #tpu.memory_space<vmem>>, vector<1x128xf32>
    tpu.vector_store %arg6[%c0_10, %c0_11], %15 {strides = array<i32>} : memref<1x128xf32, #tpu.memory_space<vmem>>, vector<1x128xf32>,
    return
  }
  func.func @transform_0(%arg0: i32) -> (i32, i32) {
    %c0_i32 = arith.constant 0 : i32
    %c0_i32_0 = arith.constant 0 : i32
    return %arg0, %c0_i32 : i32, i32
  }
  func.func @transform_1(%arg0: i32) -> (i32, i32) {
    %c0_i32 = arith.constant 0 : i32
    %c0_i32_0 = arith.constant 0 : i32
    %c0_i32_1 = arith.constant 0 : i32
    return %c0_i32, %c0_i32_0 : i32, i32
  }
  func.func @transform_2(%arg0: i32) -> (i32, i32) {
    %c0_i32 = arith.constant 0 : i32
    %c0_i32_0 = arith.constant 0 : i32
    %c0_i32_1 = arith.constant 0 : i32
    return %c0_i32, %c0_i32_0 : i32, i32
  }
  func.func @transform_3(%arg0: i32) -> (i32, i32) {
    %c0_i32 = arith.constant 0 : i32
    %c0_i32_0 = arith.constant 0 : i32
    %c0_i32_1 = arith.constant 0 : i32
    return %c0_i32, %c0_i32_0 : i32, i32
  }
  func.func @transform_4(%arg0: i32) -> i32 {
    %c0_i32 = arith.constant 0 : i32
    %c0_i32_0 = arith.constant 0 : i32
    return %c0_i32 : i32
  }
  func.func @transform_5(%arg0: i32) -> (i32, i32) {
    %c0_i32 = arith.constant 0 : i32
    %c0_i32_0 = arith.constant 0 : i32
    return %c0_i32, %arg0 : i32, i32
  }
}

</mosaic_0001>

<llo_original>
// kernel: tpu_custom_call.1
$region0: #{tpu_custom_call.1}
  #allocation0 [shape = 'u32[]', space=smem, size = 0x4, offset = 0x4, fixed_abs, tag = 'smem constant byte address 0x4 - core index']
  #allocation1 [shape = 'u32[72,128]{1,0:T(1,128)}', space=vmem, size = 0x9000, scoped, tag = 'internal scratch']
  #allocation2 [shape = 'f32[1]{0:T(128)S(6)}', space=smem, size = 0x200, scoped, tag = 'scoped memory for tpu_custom_call.1']
  %s0 = inlined_call_operand.vmem [shape: f32[128,32], index: 0, kind: input, shape index: {}]
  %s1 = inlined_call_operand.vmem [shape: f32[32,128], index: 1, kind: input, shape index: {}]
  %s2 = inlined_call_operand.vmem [shape: f32[1,128], index: 2, kind: input, shape index: {}]
  %s3 = inlined_call_operand.vmem [shape: f32[1,128], index: 3, kind: input, shape index: {}]
  %s4 = inlined_call_operand.<no memory space> [shape: f32[1], index: 4, kind: input, shape index: {}]
  %s5 = inlined_call_operand.hbm [shape: f32[1,128], index: 5, kind: output, shape index: {}]
  %s6 = sld [smem:[#allocation0]]
  $region30: #{tpu_custom_call.1} parent=0
    _
  %s8 = ssub.s32 1, %s6
  %s9 = scalar_select 0, %s8, %s6
  %10 = sst [smem:[#allocation2]] %s4
  $region1: #{tpu_custom_call.1} parent=0
    #allocation3 [shape = 'u8[512]{0}', space=vmem, size = 0x400, scoped, tag = 'output window, operand 0, single buffered']
    #allocation4 [shape = 's32[1]{0}', space=sflag, size = 0x4, scoped, tag = 'scoped memory for tpu_custom_call.1']
    %11 = vsyncpa [#allocation4], 0
    // Predicated region
    $region2: #{tpu_custom_call.1} parent=1 // pred_check
      _
    $region3: #{tpu_custom_call.1} parent=1 // pred_check_branch
      %13 = sbr.rel (0) target = $region5
    $region4: #{tpu_custom_call.1} parent=1 // pred_region
      _
    $region5: #{tpu_custom_call.1} parent=1 // pred_fallthru
      _
    // Predicated region
    $region6: #{tpu_custom_call.1} parent=1 // pred_check
      _
    $region7: #{tpu_custom_call.1} parent=1 // pred_check_branch
      %15 = sbr.rel (0) target = $region9
    $region8: #{tpu_custom_call.1} parent=1 // pred_region
      _
    $region9: #{tpu_custom_call.1} parent=1 // pred_fallthru
      _
    // Predicated region
    $region10: #{tpu_custom_call.1} parent=1 // pred_check
      _
    $region11: #{tpu_custom_call.1} parent=1 // pred_check_branch
      %17 = sbr.rel (0) target = $region13
    $region12: #{tpu_custom_call.1} parent=1 // pred_region
      _
    $region13: #{tpu_custom_call.1} parent=1 // pred_fallthru
      _
    // Predicated region
    $region14: #{tpu_custom_call.1} parent=1 // pred_check
      _
    $region15: #{tpu_custom_call.1} parent=1 // pred_check_branch
      %19 = sbr.rel (0) target = $region17
    $region16: #{tpu_custom_call.1} parent=1 // pred_region
      _
    $region17: #{tpu_custom_call.1} parent=1 // pred_fallthru
      _
    // Predicated region
    $region18: #{tpu_custom_call.1} parent=1 // pred_check
      _
    $region19: #{tpu_custom_call.1} parent=1 // pred_check_branch
      %21 = sbr.rel (0) target = $region21
    $region20: #{tpu_custom_call.1} parent=1 // pred_region
      _
    $region21: #{tpu_custom_call.1} parent=1 // pred_fallthru
      _
    %v22 = vld [vmem:[%s0] sm:$0xff]
    %v23 = vld [vmem:[%s0 + $0x8] sm:$0xff]
    %v24 = vld [vmem:[%s0 + $0x10] sm:$0xff]
    %v25 = vld [vmem:[%s0 + $0x18] sm:$0xff]
    %v26 = vld [vmem:[%s0 + $0x20] sm:$0xff]
    %v27 = vld [vmem:[%s0 + $0x28] sm:$0xff]
    %v28 = vld [vmem:[%s0 + $0x30] sm:$0xff]
    %v29 = vld [vmem:[%s0 + $0x38] sm:$0xff]
    %v30 = vld [vmem:[%s0 + $0x40] sm:$0xff]
    %v31 = vld [vmem:[%s0 + $0x48] sm:$0xff]
    %v32 = vld [vmem:[%s0 + $0x50] sm:$0xff]
    %v33 = vld [vmem:[%s0 + $0x58] sm:$0xff]
    %v34 = vld [vmem:[%s0 + $0x60] sm:$0xff]
    %v35 = vld [vmem:[%s0 + $0x68] sm:$0xff]
    %v36 = vld [vmem:[%s0 + $0x70] sm:$0xff]
    %v37 = vld [vmem:[%s0 + $0x78] sm:$0xff]
    %v38 = vld [vmem:[%s1] sm:$0xff]
    %v39 = vld [vmem:[%s1 + $0x8] sm:$0xff]
    %v40 = vld [vmem:[%s1 + $0x10] sm:$0xff]
    %v41 = vld [vmem:[%s1 + $0x18] sm:$0xff]
    %v42 = vld [vmem:[%s2] sm:$0x1]
    %v44 = vperm.slane %v42, 0
    %vm46 = vcmask 261120
    %v48 = vsel %vm46, %v22, 0
    %v51 = vsel %vm46, %v23, 0
    %v54 = vsel %vm46, %v24, 0
    %v57 = vsel %vm46, %v25, 0
    %v60 = vsel %vm46, %v26, 0
    %v63 = vsel %vm46, %v27, 0
    %v66 = vsel %vm46, %v28, 0
    %v69 = vsel %vm46, %v29, 0
    %v72 = vsel %vm46, %v30, 0
    %v75 = vsel %vm46, %v31, 0
    %v78 = vsel %vm46, %v32, 0
    %v81 = vsel %vm46, %v33, 0
    %v84 = vsel %vm46, %v34, 0
    %v87 = vsel %vm46, %v35, 0
    %v90 = vsel %vm46, %v36, 0
    %v93 = vsel %vm46, %v37, 0
    %95 = vmatpush.msra.mxu0 0.0
    %96 = vmatpush.msra.mxu0 0.0
    %97 = vmatpush.msra.mxu0 0.0
    %98 = vmatpush.msra.mxu0 0.0
    %99 = vmatpush.msra.mxu0 0.0
    %100 = vmatpush.msra.mxu0 0.0
    %101 = vmatpush.msra.mxu0 0.0
    %102 = vmatpush.msra.mxu0 0.0
    %103 = vmatpush.msra.mxu0 0.0
    %104 = vmatpush.msra.mxu0 0.0
    %105 = vmatpush.msra.mxu0 0.0
    %106 = vmatpush.msra.mxu0 0.0
    %107 = vmatpush.msra.mxu0 %v41
    %108 = vmatpush.msra.mxu0 %v40
    %109 = vmatpush.msra.mxu0 %v39
    %110 = vmatpush.msra.mxu0 %v38
    %111 = vmatmul.f32.gmra.mxu0 %v48
    %v112 = vpop.f32.mrf.mxu0
    %v113 = vadd.f32 %v44, %v112
    %114 = vmatmul.f32.gmra.mxu0 %v51
    %v115 = vpop.f32.mrf.mxu0
    %v116 = vadd.f32 %v44, %v115
    %117 = vmatmul.f32.gmra.mxu0 %v54
    %v118 = vpop.f32.mrf.mxu0
    %v119 = vadd.f32 %v44, %v118
    %120 = vmatmul.f32.gmra.mxu0 %v57
    %v121 = vpop.f32.mrf.mxu0
    %v122 = vadd.f32 %v44, %v121
    %123 = vmatmul.f32.gmra.mxu0 %v60
    %v124 = vpop.f32.mrf.mxu0
    %v125 = vadd.f32 %v44, %v124
    %126 = vmatmul.f32.gmra.mxu0 %v63
    %v127 = vpop.f32.mrf.mxu0
    %v128 = vadd.f32 %v44, %v127
    %129 = vmatmul.f32.gmra.mxu0 %v66
    %v130 = vpop.f32.mrf.mxu0
    %v131 = vadd.f32 %v44, %v130
    %132 = vmatmul.f32.gmra.mxu0 %v69
    %v133 = vpop.f32.mrf.mxu0
    %v134 = vadd.f32 %v44, %v133
    %135 = vmatmul.f32.gmra.mxu0 %v72
    %v136 = vpop.f32.mrf.mxu0
    %v137 = vadd.f32 %v44, %v136
    %138 = vmatmul.f32.gmra.mxu0 %v75
    %v139 = vpop.f32.mrf.mxu0
    %v140 = vadd.f32 %v44, %v139
    %141 = vmatmul.f32.gmra.mxu0 %v78
    %v142 = vpop.f32.mrf.mxu0
    %v143 = vadd.f32 %v44, %v142
    %144 = vmatmul.f32.gmra.mxu0 %v81
    %v145 = vpop.f32.mrf.mxu0
    %v146 = vadd.f32 %v44, %v145
    %147 = vmatmul.f32.gmra.mxu0 %v84
    %v148 = vpop.f32.mrf.mxu0
    %v149 = vadd.f32 %v44, %v148
    %150 = vmatmul.f32.gmra.mxu0 %v87
    %v151 = vpop.f32.mrf.mxu0
    %v152 = vadd.f32 %v44, %v151
    %153 = vmatmul.f32.gmra.mxu0 %v90
    %v154 = vpop.f32.mrf.mxu0
    %v155 = vadd.f32 %v44, %v154
    %156 = vmatmul.f32.gmra.mxu0 %v93
    %v157 = vpop.f32.mrf.mxu0
    %v158 = vadd.f32 %v44, %v157
    %159 = vdwg.mxu0
    %v160 = vmax.f32 %v113, 0.0
    %v161 = vmax.f32 %v116, 0.0
    %v162 = vmax.f32 %v119, 0.0
    %v163 = vmax.f32 %v122, 0.0
    %v164 = vmax.f32 %v125, 0.0
    %v165 = vmax.f32 %v128, 0.0
    %v166 = vmax.f32 %v131, 0.0
    %v167 = vmax.f32 %v134, 0.0
    %v168 = vmax.f32 %v137, 0.0
    %v169 = vmax.f32 %v140, 0.0
    %v170 = vmax.f32 %v143, 0.0
    %v171 = vmax.f32 %v146, 0.0
    %v172 = vmax.f32 %v149, 0.0
    %v173 = vmax.f32 %v152, 0.0
    %v174 = vmax.f32 %v155, 0.0
    %v175 = vmax.f32 %v158, 0.0
    %v176 = vld [vmem:[%s3] sm:$0x1]
    %v178 = vperm.slane %v176, 0
    %v180 = vmul.f32 %v160, %v178
    %v181 = vmul.f32 %v161, %v178
    %v182 = vmul.f32 %v162, %v178
    %v183 = vmul.f32 %v163, %v178
    %v184 = vmul.f32 %v164, %v178
    %v185 = vmul.f32 %v165, %v178
    %v186 = vmul.f32 %v166, %v178
    %v187 = vmul.f32 %v167, %v178
    %v188 = vmul.f32 %v168, %v178
    %v189 = vmul.f32 %v169, %v178
    %v190 = vmul.f32 %v170, %v178
    %v191 = vmul.f32 %v171, %v178
    %v192 = vmul.f32 %v172, %v178
    %v193 = vmul.f32 %v173, %v178
    %v194 = vmul.f32 %v174, %v178
    %v195 = vmul.f32 %v175, %v178
    %196 = vadd.xlane.f32.xlu0 %v180
    %v197 = vpop.xlane.xlu0 %196
    %198 = vadd.xlane.f32.xlu0 %v181
    %v199 = vpop.xlane.xlu0 %198
    %200 = vadd.xlane.f32.xlu0 %v182
    %v201 = vpop.xlane.xlu0 %200
    %202 = vadd.xlane.f32.xlu0 %v183
    %v203 = vpop.xlane.xlu0 %202
    %204 = vadd.xlane.f32.xlu0 %v184
    %v205 = vpop.xlane.xlu0 %204
    %206 = vadd.xlane.f32.xlu0 %v185
    %v207 = vpop.xlane.xlu0 %206
    %208 = vadd.xlane.f32.xlu0 %v186
    %v209 = vpop.xlane.xlu0 %208
    %210 = vadd.xlane.f32.xlu0 %v187
    %v211 = vpop.xlane.xlu0 %210
    %212 = vadd.xlane.f32.xlu0 %v188
    %v213 = vpop.xlane.xlu0 %212
    %214 = vadd.xlane.f32.xlu0 %v189
    %v215 = vpop.xlane.xlu0 %214
    %216 = vadd.xlane.f32.xlu0 %v190
    %v217 = vpop.xlane.xlu0 %216
    %218 = vadd.xlane.f32.xlu0 %v191
    %v219 = vpop.xlane.xlu0 %218
    %220 = vadd.xlane.f32.xlu0 %v192
    %v221 = vpop.xlane.xlu0 %220
    %222 = vadd.xlane.f32.xlu0 %v193
    %v223 = vpop.xlane.xlu0 %222
    %224 = vadd.xlane.f32.xlu0 %v194
    %v225 = vpop.xlane.xlu0 %224
    %226 = vadd.xlane.f32.xlu0 %v195
    %v227 = vpop.xlane.xlu0 %226
    %s228 = sld [smem:[#allocation2]]
    %v229 = vstv %s228
    %v230 = vadd.f32 %v197, %v229
    %v231 = vadd.f32 %v199, %v229
    %v232 = vadd.f32 %v201, %v229
    %v233 = vadd.f32 %v203, %v229
    %v234 = vadd.f32 %v205, %v229
    %v235 = vadd.f32 %v207, %v229
    %v236 = vadd.f32 %v209, %v229
    %v237 = vadd.f32 %v211, %v229
    %v238 = vadd.f32 %v213, %v229
    %v239 = vadd.f32 %v215, %v229
    %v240 = vadd.f32 %v217, %v229
    %v241 = vadd.f32 %v219, %v229
    %v242 = vadd.f32 %v221, %v229
    %v243 = vadd.f32 %v223, %v229
    %v244 = vadd.f32 %v225, %v229
    %v245 = vadd.f32 %v227, %v229
    %v262 = vlaneseq
    %v263 = vand.u32 %v262, 127
    %v264 = vperm.slane %v230, %v263
    %v265 = vadd.s32 %v263, 4294967288
    %v266 = vperm.slane %v231, %v265
    %vm267 = vcmask 130112
    %v268 = vsel %vm267, %v266, %v264
    %v269 = vadd.s32 %v263, 4294967280
    %v270 = vperm.slane %v232, %v269
    %vm271 = vcmask 195712
    %v272 = vsel %vm271, %v270, %v268
    %v273 = vadd.s32 %v263, 4294967272
    %v274 = vperm.slane %v233, %v273
    %vm275 = vcmask 261312
    %v276 = vsel %vm275, %v274, %v272
    %v277 = vadd.s32 %v263, 4294967264
    %v278 = vperm.slane %v234, %v277
    %vm279 = vcmask 326912
    %v280 = vsel %vm279, %v278, %v276
    %v281 = vadd.s32 %v263, 4294967256
    %v282 = vperm.slane %v235, %v281
    %vm283 = vcmask 392512
    %v284 = vsel %vm283, %v282, %v280
    %v285 = vadd.s32 %v263, 4294967248
    %v286 = vperm.slane %v236, %v285
    %vm287 = vcmask 458112
    %v288 = vsel %vm287, %v286, %v284
    %v289 = vadd.s32 %v263, 4294967240
    %v290 = vperm.slane %v237, %v289
    %vm291 = vcmask 523712
    %v292 = vsel %vm291, %v290, %v288
    %v293 = vadd.s32 %v263, 4294967232
    %v294 = vperm.slane %v238, %v293
    %vm295 = vcmask 589312
    %v296 = vsel %vm295, %v294, %v292
    %v297 = vadd.s32 %v263, 4294967224
    %v298 = vperm.slane %v239, %v297
    %vm299 = vcmask 654912
    %v300 = vsel %vm299, %v298, %v296
    %v301 = vadd.s32 %v263, 4294967216
    %v302 = vperm.slane %v240, %v301
    %vm303 = vcmask 720512
    %v304 = vsel %vm303, %v302, %v300
    %v305 = vadd.s32 %v263, 4294967208
    %v306 = vperm.slane %v241, %v305
    %vm307 = vcmask 786112
    %v308 = vsel %vm307, %v306, %v304
    %v309 = vadd.s32 %v263, 4294967200
    %v310 = vperm.slane %v242, %v309
    %vm311 = vcmask 851712
    %v312 = vsel %vm311, %v310, %v308
    %v313 = vadd.s32 %v263, 4294967192
    %v314 = vperm.slane %v243, %v313
    %vm315 = vcmask 917312
    %v316 = vsel %vm315, %v314, %v312
    %v317 = vadd.s32 %v263, 4294967184
    %v318 = vperm.slane %v244, %v317
    %vm319 = vcmask 982912
    %v320 = vsel %vm319, %v318, %v316
    %v321 = vadd.s32 %v263, 4294967176
    %v322 = vperm.slane %v245, %v321
    %vm323 = vcmask 1048512
    %v324 = vsel %vm323, %v322, %v320
    %326 = vst [vmem:[#allocation3] sm:$0x1] %v324
    // Predicated region
    $region22: #{tpu_custom_call.1} parent=1 // pred_check
      _
    $region23: #{tpu_custom_call.1} parent=1 // pred_check_branch
      %328 = sbr.rel (0) target = $region25
    $region24: #{tpu_custom_call.1} parent=1 // pred_region
      %330 = vsyncadd [#allocation4], 0
      %s332 = sshll.u32 [#allocation3], 4
      %s333 = int_to_ptr.vmem [resolvable:$true] %s332
      %s334 = sshll.u32 %s5, 4
      %s335 = int_to_ptr.hbm [resolvable:$true] %s334
      %337 = dma.vmem_to_hbm [thread:$0]  %s333, 16, %s335, [#allocation4]
    $region25: #{tpu_custom_call.1} parent=1 // pred_fallthru
      _
    // Predicated region
    $region26: #{tpu_custom_call.1} parent=1 // pred_check
      _
    $region27: #{tpu_custom_call.1} parent=1 // pred_check_branch
      %339 = sbr.rel (0) target = $region29
    $region28: #{tpu_custom_call.1} parent=1 // pred_region
      %341 = dma.done [#allocation4], 16
    $region29: #{tpu_custom_call.1} parent=1 // pred_fallthru
      _
    %342 = vsyncpa [#allocation4], 1

</llo_original>
